<compile_context>
chip_gen: v6e
topology: v6e:2x2x1
jax: 0.10.0
libtpu: 0.0.40
codegen_flags: <defaults>
</compile_context>

<pallas_src>
import functools

import jax
import jax.numpy as jnp
from jax.experimental import pallas as pl
from jax.experimental.pallas import tpu as pltpu

_BN_EPS = 1e-5
_LANE = 128


# ----------------------------------------------------------------------------- helpers

def _round_up(x, m):
    return ((x + m - 1) // m) * m


def _vmem_limit_bytes():
    """Per-generation VMEM budget (v7x: 64 MiB/TC, v5e/v6e: 128 MiB)."""
    try:
        cap = pltpu.get_tpu_info().vmem_capacity_bytes
    except Exception:  # conservative fallback if the query is unavailable
        cap = 64 * 1024 * 1024
    return min(int(cap * 0.85), 112 * 1024 * 1024)


def _pick_tiles(n):
    """Return (n_pad, tm, tk): padded node count, row tile, reduction tile."""
    if n <= 512:
        n_pad = _round_up(max(n, 1), 128)
        return n_pad, n_pad, n_pad            # single tile
    if n <= 8192:
        n_pad = _round_up(n, 1024)
        return n_pad, 512, 1024
    n_pad = _round_up(n, 2048)
    return n_pad, 512, 2048


def _pad2(x, rows, cols):
    """Zero-pad a 2D array up to (rows, cols)."""
    r, c = x.shape
    return jnp.zeros((rows, cols), x.dtype).at[:r, :c].set(x)


# ----------------------------------------------------------------------------- kernels

def _spmm_stats_kernel(a_ref, xw_ref, h_ref, stats_ref, *, tk, xw_resident):
    """H row-tile = sum_k A[i,k] @ XW[k], accumulated straight into the revisited
    f32 output block.  The finalize step also emits the per-row-tile feature
    sum and sum-of-squares (rows 0/1 of an 8-row block) for BatchNorm."""
    k = pl.program_id(1)

    @pl.when(k == 0)
    def _():
        h_ref[...] = jnp.zeros_like(h_ref)

    if xw_resident:
        start = pl.multiple_of(k * tk, tk)
        xw = xw_ref[pl.ds(start, tk), :]      # VMEM-resident XW, sliced per k
    else:
        xw = xw_ref[...]                      # streamed (tk, f) block

    h_ref[...] += jnp.dot(a_ref[...], xw, preferred_element_type=jnp.float32)

    @pl.when(k == pl.num_programs(1) - 1)
    def _():
        h = h_ref[...]
        psum = jnp.sum(h, axis=0, keepdims=True)        # (1, f)
        psumsq = jnp.sum(h * h, axis=0, keepdims=True)  # (1, f)
        row = jax.lax.broadcasted_iota(jnp.int32, (8, h.shape[1]), 0)
        blk = jnp.where(row == 0, psum, jnp.where(row == 1, psumsq, 0.0))
        stats_ref[...] = blk[None]


def _bn_relu_xw_kernel(h_ref, mean_ref, scale_ref, beta_ref, w_ref, xw_ref):
    """xw = relu((h - mean) * scale + beta) @ W   (BN folded to mean/scale/beta).

    BN/ReLU math runs in f32 on the VPU and hides under the MXU matmul."""
    y = (h_ref[...] - mean_ref[...]) * scale_ref[...] + beta_ref[...]
    y = jnp.maximum(y, 0.0).astype(jnp.bfloat16)
    xw_ref[...] = jnp.dot(
        y, w_ref[...], preferred_element_type=jnp.float32
    ).astype(xw_ref.dtype)


# ----------------------------------------------------------------------------- pallas_call wrappers

def adj_matmul_stats(a, xw, tm, tk, vmem_limit):
    """H = A @ XW (f32) + per-row-tile BN partial statistics."""
    n_pad = a.shape[0]
    f_out = xw.shape[1]
    n_i, n_k = n_pad // tm, n_pad // tk

    # Keep XW fully VMEM-resident (DMA'd once thanks to the constant block
    # index) unless it is too large for the per-chip VMEM budget.
    xw_bytes = n_pad * f_out * xw.dtype.itemsize
    xw_resident = (2 * xw_bytes) <= (vmem_limit // 3)
    if xw_resident:
        xw_spec = pl.BlockSpec((n_pad, f_out), lambda i, k: (0, 0))
    else:
        xw_spec = pl.BlockSpec((tk, f_out), lambda i, k: (k, 0))

    kernel = functools.partial(_spmm_stats_kernel, tk=tk, xw_resident=xw_resident)
    return pl.pallas_call(
        kernel,
        out_shape=(
            jax.ShapeDtypeStruct((n_pad, f_out), jnp.float32),
            jax.ShapeDtypeStruct((n_i, 8, f_out), jnp.float32),
        ),
        grid=(n_i, n_k),
        in_specs=[
            pl.BlockSpec((tm, tk), lambda i, k: (i, k)),
            xw_spec,
        ],
        out_specs=(
            pl.BlockSpec((tm, f_out), lambda i, k: (i, 0)),
            pl.BlockSpec((1, 8, f_out), lambda i, k: (i, 0, 0)),
        ),
        compiler_params=pltpu.CompilerParams(
            dimension_semantics=("parallel", "arbitrary"),
            vmem_limit_bytes=vmem_limit,
        ),
    )(a, xw)


def bn_relu_xw(h, mean, scale, beta, w, tm, vmem_limit):
    """Fused BatchNorm(train) + ReLU + next-layer X@W (row-tiled, bf16 output)."""
    n_pad, f_in = h.shape
    f_out = w.shape[1]
    return pl.pallas_call(
        _bn_relu_xw_kernel,
        out_shape=jax.ShapeDtypeStruct((n_pad, f_out), jnp.bfloat16),
        grid=(n_pad // tm,),
        in_specs=[
            pl.BlockSpec((tm, f_in), lambda i: (i, 0)),
            pl.BlockSpec((1, f_in), lambda i: (0, 0)),
            pl.BlockSpec((1, f_in), lambda i: (0, 0)),
            pl.BlockSpec((1, f_in), lambda i: (0, 0)),
            pl.BlockSpec((f_in, f_out), lambda i: (0, 0)),
        ],
        out_specs=pl.BlockSpec((tm, f_out), lambda i: (i, 0)),
        compiler_params=pltpu.CompilerParams(
            dimension_semantics=("parallel",),
            vmem_limit_bytes=vmem_limit,
        ),
    )(h, mean, scale, beta, w)


# ----------------------------------------------------------------------------- model

def init_digcn_params(key, nfeat, nhid, nlayer=2):
    """Deterministic glorot-style init for DIGCNConv weights; BN gamma=1, beta=0."""
    params = {"conv_w": [], "bn_gamma": [], "bn_beta": []}
    dims = [nfeat] + [nhid] * nlayer
    for i in range(nlayer):
        key, sub = jax.random.split(key)
        fan_in, fan_out = dims[i], dims[i + 1]
        scale = jnp.sqrt(6.0 / (fan_in + fan_out))
        w = jax.random.uniform(sub, (fan_in, fan_out), jnp.float32, -scale, scale)
        params["conv_w"].append(w)
        params["bn_gamma"].append(jnp.ones((1, nhid), jnp.float32))
        params["bn_beta"].append(jnp.zeros((1, nhid), jnp.float32))
    return params


def build_dense_adjacency(edge_index, edge_attr, n_pad):
    """Dense directed adjacency A[dst, src] = sum of edge weights ('add').

    Built once and reused by every layer / forward call."""
    src, dst = edge_index[0], edge_index[1]
    a = jnp.zeros((n_pad, n_pad), jnp.float32).at[dst, src].add(edge_attr)
    return a.astype(jnp.bfloat16)


def _fold_bn(stats, n_real, gamma, beta, eps=_BN_EPS):
    """Combine per-row-tile partial sums into training-mode BatchNorm1d affine.

    Padded (zero) rows of H contribute nothing, so dividing by the real node
    count gives exact full-batch statistics."""
    s = jnp.sum(stats[:, 0, :], axis=0, keepdims=True)
    ss = jnp.sum(stats[:, 1, :], axis=0, keepdims=True)
    mean = s / n_real
    var = jnp.maximum(ss / n_real - mean * mean, 0.0)
    scale = gamma * jax.lax.rsqrt(var + eps)
    return mean, scale, beta


def digcn_forward(params, x, a, batch, num_graphs, nlayer=2):
    """Mirror of DiGCN.forward (train-mode BatchNorm1d, dropout p=0.0 -> identity).

    `a` is the pre-built padded bf16 dense adjacency from build_dense_adjacency."""
    n, _ = x.shape
    nhid = params["conv_w"][0].shape[1]
    n_pad, tm, tk = _pick_tiles(n)
    assert a.shape == (n_pad, n_pad), "adjacency padding must match _pick_tiles(n)"
    f_pad = _round_up(nhid, _LANE)
    vmem_limit = _vmem_limit_bytes()

    # First-layer X @ W0 in plain XLA: nfeat is tiny (no 16x zero-padding work),
    # Pallas takes over at the bandwidth-heavy A @ XW stage.
    xw = jnp.zeros((n_pad, f_pad), jnp.float32).at[:n, :nhid].set(
        x.astype(jnp.float32) @ params["conv_w"][0]
    ).astype(jnp.bfloat16)

    h = None
    for i in range(nlayer):
        # H = A @ XW with BN partial statistics fused into the SpMM finalize.
        h, stats = adj_matmul_stats(a, xw, tm, tk, vmem_limit)
        if i == nlayer - 1:
            break
        gamma = _pad2(params["bn_gamma"][i], 1, f_pad)   # zero-padded lanes -> BN output 0 there
        beta = _pad2(params["bn_beta"][i], 1, f_pad)
        mean, scale, beta = _fold_bn(stats, float(n), gamma, beta)
        w_next = _pad2(params["conv_w"][i + 1], f_pad, f_pad).astype(jnp.bfloat16)
        # Fused BatchNorm + ReLU + next-layer X@W; normalised activations never
        # touch HBM.  F.dropout(p=0.0) -> identity.
        # TODO(synk): non-zero dropout not implemented.
        xw = bn_relu_xw(h, mean, scale, beta, w_next, tm, vmem_limit)
        # Padded rows of xw are nonzero (relu(beta - mean*scale) @ W) but harmless:
        # A's padded columns are zero and the final slice strips padded rows.

    out = h[:n, :nhid]
    # Per-graph split (eager only; data-dependent output shapes).
    return [out[batch == g] for g in range(num_graphs)]


def digcn_reference(params, x, edge_index, edge_attr, batch, num_graphs, nlayer=2):
    """Pure-JAX f32 reference mirroring the PyTorch module (for correctness)."""
    n = x.shape[0]
    src, dst = edge_index[0], edge_index[1]
    a = jnp.zeros((n, n), jnp.float32).at[dst, src].add(edge_attr)
    h = x.astype(jnp.float32)
    for i in range(nlayer):
        h = a @ (h @ params["conv_w"][i])
        if i == nlayer - 1:
            break
        mean = jnp.mean(h, axis=0, keepdims=True)
        var = jnp.var(h, axis=0, keepdims=True)
        h = (h - mean) * jax.lax.rsqrt(var + _BN_EPS)
        h = h * params["bn_gamma"][i] + params["bn_beta"][i]
        h = jnp.maximum(h, 0.0)
    return [h[batch == g] for g in range(num_graphs)]


# ----------------------------------------------------------------------------- main

if __name__ == "__main__":
    key = jax.random.PRNGKey(0)

    # Small shapes: 2 graphs x 8 nodes = 16 nodes, nfeat=8, nhid=32, nlayer=2.
    num_graphs = 2
    nodes_per_graph = 8
    n = num_graphs * nodes_per_graph
    nfeat, nhid, nlayer = 8, 32, 2
    num_edges = 48

    k_x, k_src, k_dst, k_w, k_p = jax.random.split(key, 5)
    x = jax.random.normal(k_x, (n, nfeat), jnp.float32)

    # Directed edges kept within each graph (deterministic).
    src_local = jax.random.randint(k_src, (num_edges,), 0, nodes_per_graph)
    dst_local = jax.random.randint(k_dst, (num_edges,), 0, nodes_per_graph)
    graph_of_edge = jnp.arange(num_edges) % num_graphs
    src = src_local + graph_of_edge * nodes_per_graph
    dst = dst_local + graph_of_edge * nodes_per_graph
    edge_index = jnp.stack([src, dst], axis=0)
    edge_attr = jax.random.uniform(k_w, (num_edges,), jnp.float32, 0.1, 1.0)

    batch = jnp.repeat(jnp.arange(num_graphs), nodes_per_graph)

    params = init_digcn_params(k_p, nfeat, nhid, nlayer)

    # Adjacency built once and reused across layers (and would be across calls).
    n_pad, _, _ = _pick_tiles(n)
    a = build_dense_adjacency(edge_index, edge_attr, n_pad)

    emb_list = digcn_forward(params, x, a, batch, num_graphs, nlayer=nlayer)
    for emb in emb_list:
        jax.block_until_ready(emb)

    assert len(emb_list) == num_graphs
    assert emb_list[0].shape == (nodes_per_graph, nhid)
    assert emb_list[1].shape == (nodes_per_graph, nhid)
    assert all(bool(jnp.isfinite(e).all()) for e in emb_list)

    # Compare against the pure-JAX f32 reference (bf16 MXU operands -> loose tol).
    ref_list = digcn_reference(params, x, edge_index, edge_attr, batch,
                               num_graphs, nlayer=nlayer)
    for got, ref in zip(emb_list, ref_list):
        err = float(jnp.max(jnp.abs(got - ref)))
        mag = float(jnp.maximum(jnp.max(jnp.abs(ref)), 1.0))
        assert err <= 0.05 * mag + 0.05, (err, mag)

    print("KERNEL_OK")
</pallas_src>

<mosaic_0001>
module attributes {stable_mosaic.version = 11 : i64} {
  func.func @_spmm_stats_kernel(%arg0: i32, %arg1: i32, %arg2: memref<128x128xbf16, #tpu.memory_space<vmem>>, %arg3: memref<128x128xbf16, #tpu.memory_space<vmem>>, %arg4: memref<128x128xf32, #tpu.memory_space<vmem>>, %arg5: memref<1x8x128xf32, #tpu.memory_space<vmem>>) attributes {dimension_semantics = [#tpu.dimension_semantics<parallel>, #tpu.dimension_semantics<arbitrary>], iteration_bounds = array<i64: 1, 1>, scalar_prefetch = 0 : i64, scratch_operands = 0 : i64, tpu.core_type = #tpu.core_type<tc>, window_params = [{transform_indices = @transform_0, window_bounds = array<i64: 128, 128>}, {pipeline_mode = #tpu.pipeline_mode<synchronous>, transform_indices = @transform_1, window_bounds = array<i64: 128, 128>}, {transform_indices = @transform_2, window_bounds = array<i64: 128, 128>}, {transform_indices = @transform_3, window_bounds = array<i64: 1, 8, 128>}]} {
    %c0_i32 = arith.constant 0 : i32
    %0 = arith.cmpi eq, %arg1, %c0_i32 : i32
    %1 = arith.extui %0 : i1 to i32
    %c0_i32_0 = arith.constant 0 : i32
    %2 = arith.cmpi ne, %1, %c0_i32_0 : i32
    scf.if %2 {
      %cst_9 = arith.constant 0.000000e+00 : f32
      %15 = vector.broadcast %cst_9 : f32 to vector<128x128xf32>
      %c0_10 = arith.constant 0 : index
      %c0_11 = arith.constant 0 : index
      %16 = vector.load %arg4[%c0_10, %c0_11] : memref<128x128xf32, #tpu.memory_space<vmem>>, vector<128x128xf32>
      tpu.vector_store %arg4[%c0_10, %c0_11], %15 {strides = array<i32>} : memref<128x128xf32, #tpu.memory_space<vmem>>, vector<128x128xf32>,
    } else {
    }
    %c128_i32 = arith.constant 128 : i32
    %3 = arith.muli %arg1, %c128_i32 : i32
    %4 = tpu.assume_multiple %3, 128 : i32
    %5 = arith.index_cast %4 : i32 to index
    %c0 = arith.constant 0 : index
    %6 = vector.load %arg3[%5, %c0] : memref<128x128xbf16, #tpu.memory_space<vmem>>, vector<128x128xbf16>
    %c0_1 = arith.constant 0 : index
    %c0_2 = arith.constant 0 : index
    %7 = vector.load %arg4[%c0_1, %c0_2] : memref<128x128xf32, #tpu.memory_space<vmem>>, vector<128x128xf32>
    %c0_3 = arith.constant 0 : index
    %c0_4 = arith.constant 0 : index
    %8 = vector.load %arg2[%c0_3, %c0_4] : memref<128x128xbf16, #tpu.memory_space<vmem>>, vector<128x128xbf16>
    %cst = arith.constant dense<0.000000e+00> : vector<128x128xf32>
    %9 = tpu.matmul %8, %6, %cst {dimension_numbers = #tpu.dot_dimension_numbers<[1], [0], [0], [1], [0, 0, 1, 1], [], []>} : vector<128x128xbf16>, vector<128x128xbf16>, vector<128x128xf32> -> vector<128x128xf32>
    %10 = arith.addf %7, %9 : vector<128x128xf32>
    %c0_5 = arith.constant 0 : index
    %c0_6 = arith.constant 0 : index
    %11 = vector.load %arg4[%c0_5, %c0_6] : memref<128x128xf32, #tpu.memory_space<vmem>>, vector<128x128xf32>
    tpu.vector_store %arg4[%c0_5, %c0_6], %10 {strides = array<i32>} : memref<128x128xf32, #tpu.memory_space<vmem>>, vector<128x128xf32>,
    %c0_i32_7 = arith.constant 0 : i32
    %12 = arith.cmpi eq, %arg1, %c0_i32_7 : i32
    %13 = arith.extui %12 : i1 to i32
    %c0_i32_8 = arith.constant 0 : i32
    %14 = arith.cmpi ne, %13, %c0_i32_8 : i32
    scf.if %14 {
      %c0_9 = arith.constant 0 : index
      %c0_10 = arith.constant 0 : index
      %15 = vector.load %arg4[%c0_9, %c0_10] : memref<128x128xf32, #tpu.memory_space<vmem>>, vector<128x128xf32>
      %cst_11 = arith.constant dense<0.000000e+00> : vector<128xf32>
      %16 = vector.multi_reduction <add>, %15, %cst_11 [0] : vector<128x128xf32> to vector<128xf32>
      %17 = vector.shape_cast %16 : vector<128xf32> to vector<1x128xf32>
      %18 = arith.mulf %15, %15 : vector<128x128xf32>
      %cst_12 = arith.constant dense<0.000000e+00> : vector<128xf32>
      %19 = vector.multi_reduction <add>, %18, %cst_12 [0] : vector<128x128xf32> to vector<128xf32>
      %20 = vector.shape_cast %19 : vector<128xf32> to vector<1x128xf32>
      %21 = tpu.iota {dimensions = array<i32: 0>} : vector<8x128xi32>
      %c0_i32_13 = arith.constant 0 : i32
      %22 = vector.broadcast %c0_i32_13 : i32 to vector<8x128xi32>
      %23 = arith.cmpi eq, %21, %22 : vector<8x128xi32>
      %c1_i32 = arith.constant 1 : i32
      %24 = vector.broadcast %c1_i32 : i32 to vector<8x128xi32>
      %25 = arith.cmpi eq, %21, %24 : vector<8x128xi32>
      %cst_14 = arith.constant 0.000000e+00 : f32
      %26 = vector.shape_cast %20 : vector<1x128xf32> to vector<1x128xf32>
      %27 = vector.broadcast %26 : vector<1x128xf32> to vector<8x128xf32>
      %28 = vector.broadcast %cst_14 : f32 to vector<8x128xf32>
      %29 = arith.select %25, %27, %28 : vector<8x128xi1>, vector<8x128xf32>
      %30 = vector.shape_cast %17 : vector<1x128xf32> to vector<1x128xf32>
      %31 = vector.broadcast %30 : vector<1x128xf32> to vector<8x128xf32>
      %32 = arith.select %23, %31, %29 : vector<8x128xi1>, vector<8x128xf32>
      %33 = vector.shape_cast %32 : vector<8x128xf32> to vector<1x8x128xf32>
      %c0_15 = arith.constant 0 : index
      %c0_16 = arith.constant 0 : index
      %c0_17 = arith.constant 0 : index
      %34 = vector.load %arg5[%c0_15, %c0_16, %c0_17] : memref<1x8x128xf32, #tpu.memory_space<vmem>>, vector<1x8x128xf32>
      tpu.vector_store %arg5[%c0_15, %c0_16, %c0_17], %33 {strides = array<i32>} : memref<1x8x128xf32, #tpu.memory_space<vmem>>, vector<1x8x128xf32>,
    } else {
    }
    return
  }
  func.func @transform_0(%arg0: i32, %arg1: i32) -> (i32, i32) {
    %c0_i32 = arith.constant 0 : i32
    return %arg0, %arg1 : i32, i32
  }
  func.func @transform_1(%arg0: i32, %arg1: i32) -> (i32, i32) {
    %c0_i32 = arith.constant 0 : i32
    %c0_i32_0 = arith.constant 0 : i32
    %c0_i32_1 = arith.constant 0 : i32
    return %c0_i32, %c0_i32_0 : i32, i32
  }
  func.func @transform_2(%arg0: i32, %arg1: i32) -> (i32, i32) {
    %c0_i32 = arith.constant 0 : i32
    %c0_i32_0 = arith.constant 0 : i32
    return %arg0, %c0_i32 : i32, i32
  }
  func.func @transform_3(%arg0: i32, %arg1: i32) -> (i32, i32, i32) {
    %c0_i32 = arith.constant 0 : i32
    %c0_i32_0 = arith.constant 0 : i32
    %c0_i32_1 = arith.constant 0 : i32
    return %arg0, %c0_i32, %c0_i32_0 : i32, i32, i32
  }
}

</mosaic_0001>

<llo_original>
// kernel: tpu_custom_call.1
$region0: #{tpu_custom_call.1}
  #allocation0 [shape = 'u32[]', space=smem, size = 0x4, offset = 0x4, fixed_abs, tag = 'smem constant byte address 0x4 - core index']
  #allocation1 [shape = 'u32[144,128]{1,0:T(1,128)}', space=vmem, size = 0x12000, scoped, tag = 'internal scratch']
  %s0 = inlined_call_operand.hbm [shape: bf16[128,128], index: 0, kind: input, shape index: {}]
  %s1 = inlined_call_operand.hbm [shape: bf16[128,128], index: 1, kind: input, shape index: {}]
  %s2 = inlined_call_operand.hbm [shape: f32[128,128], index: 2, kind: output, shape index: {0}]
  %s3 = inlined_call_operand.hbm [shape: f32[1,8,128], index: 3, kind: output, shape index: {1}]
  %4 = xla_tuple %s2, %s3
  %s5 = sld [smem:[#allocation0]]
  $region42: #{tpu_custom_call.1} parent=0
    _
  %s7 = ssub.s32 1, %s5
  %s8 = scalar_select 0, %s7, %s5
  $region1: #{tpu_custom_call.1} parent=0
    #allocation2 [shape = 'u8[32768]{0}', space=vmem, size = 0x8000, scoped, tag = 'input window, operand 0, single buffered']
    #allocation3 [shape = 's32[1]{0}', space=sflag, size = 0x4, scoped, tag = 'scoped memory for tpu_custom_call.1']
    #allocation4 [shape = 's32[1]{0}', space=sflag, size = 0x4, scoped, tag = 'scoped memory for tpu_custom_call.1']
    #allocation5 [shape = 'u8[32768]{0}', space=vmem, size = 0x8000, scoped, tag = 'input window, operand 1, single buffered']
    #allocation6 [shape = 's32[1]{0}', space=sflag, size = 0x4, scoped, tag = 'scoped memory for tpu_custom_call.1']
    #allocation7 [shape = 'u8[65536]{0}', space=vmem, size = 0x10000, scoped, tag = 'output window, operand 0, single buffered']
    #allocation8 [shape = 'u8[4096]{0}', space=vmem, size = 0x1000, scoped, tag = 'output window, operand 1, single buffered']
    #allocation9 [shape = 's32[1]{0}', space=sflag, size = 0x4, scoped, tag = 'scoped memory for tpu_custom_call.1']
    %9 = vsyncpa [#allocation3], 0
    %10 = vsyncpa [#allocation6], 0
    %11 = vsyncpa [#allocation4], 0
    %12 = vsyncpa [#allocation9], 0
    // Predicated region
    $region2: #{tpu_custom_call.1} parent=1 // pred_check
      _
    $region3: #{tpu_custom_call.1} parent=1 // pred_check_branch
      %14 = sbr.rel (0) target = $region5
    $region4: #{tpu_custom_call.1} parent=1 // pred_region
      %s16 = ssub.s32 1024, 1024
      %17 = vsyncadd [#allocation3], %s16
      %s18 = sshll.u32 [#allocation2], 4
      %s19 = int_to_ptr.vmem [resolvable:$true] %s18
      %24 = dma.hbm_to_vmem [thread:$0]  %s0, 1024, %s19, [#allocation3], 64, 64, 4
    $region5: #{tpu_custom_call.1} parent=1 // pred_fallthru
      _
    // Predicated region
    $region6: #{tpu_custom_call.1} parent=1 // pred_check
      _
    $region7: #{tpu_custom_call.1} parent=1 // pred_check_branch
      %26 = sbr.rel (0) target = $region9
    $region8: #{tpu_custom_call.1} parent=1 // pred_region
      %s28 = ssub.s32 1024, 1024
      %29 = vsyncadd [#allocation6], %s28
      %s30 = sshll.u32 [#allocation5], 4
      %s31 = int_to_ptr.vmem [resolvable:$true] %s30
      %36 = dma.hbm_to_vmem [thread:$0]  %s1, 1024, %s31, [#allocation6], 64, 64, 4
    $region9: #{tpu_custom_call.1} parent=1 // pred_fallthru
      _
    // Predicated region
    $region10: #{tpu_custom_call.1} parent=1 // pred_check
      _
    $region11: #{tpu_custom_call.1} parent=1 // pred_check_branch
      %38 = sbr.rel (0) target = $region13
    $region12: #{tpu_custom_call.1} parent=1 // pred_region
      %39 = dma.done [#allocation3], 1024
    $region13: #{tpu_custom_call.1} parent=1 // pred_fallthru
      _
    // Predicated region
    $region14: #{tpu_custom_call.1} parent=1 // pred_check
      _
    $region15: #{tpu_custom_call.1} parent=1 // pred_check_branch
      %41 = sbr.rel (0) target = $region17
    $region16: #{tpu_custom_call.1} parent=1 // pred_region
      %42 = dma.done [#allocation6], 1024
    $region17: #{tpu_custom_call.1} parent=1 // pred_fallthru
      _
    %p44 = scmp.eq.s32.totalorder 0, 0
    // Predicated region
    $region18: #{tpu_custom_call.1} parent=1 // pred_check
      %p45 = pneg %p44
    $region19: #{tpu_custom_call.1} parent=1 // pred_check_branch
      %47 = sbr.rel (%p45) target = $region21
    $region20: #{tpu_custom_call.1} parent=1 // pred_region
      %48 = vst [vmem:[#allocation7] sm:$0xff] 0.0
      %49 = vst [vmem:[#allocation7 + $0x8] sm:$0xff] 0.0
      %50 = vst [vmem:[#allocation7 + $0x10] sm:$0xff] 0.0
      %51 = vst [vmem:[#allocation7 + $0x18] sm:$0xff] 0.0
      %52 = vst [vmem:[#allocation7 + $0x20] sm:$0xff] 0.0
      %53 = vst [vmem:[#allocation7 + $0x28] sm:$0xff] 0.0
      %54 = vst [vmem:[#allocation7 + $0x30] sm:$0xff] 0.0
      %55 = vst [vmem:[#allocation7 + $0x38] sm:$0xff] 0.0
      %56 = vst [vmem:[#allocation7 + $0x40] sm:$0xff] 0.0
      %57 = vst [vmem:[#allocation7 + $0x48] sm:$0xff] 0.0
      %58 = vst [vmem:[#allocation7 + $0x50] sm:$0xff] 0.0
      %59 = vst [vmem:[#allocation7 + $0x58] sm:$0xff] 0.0
      %60 = vst [vmem:[#allocation7 + $0x60] sm:$0xff] 0.0
      %61 = vst [vmem:[#allocation7 + $0x68] sm:$0xff] 0.0
      %62 = vst [vmem:[#allocation7 + $0x70] sm:$0xff] 0.0
      %63 = vst [vmem:[#allocation7 + $0x78] sm:$0xff] 0.0
    $region21: #{tpu_custom_call.1} parent=1 // pred_fallthru
      _
    %s64 = smul.u32 0, 128
    %s65 = sshra.s32 %s64, 3
    %s66 = sand.u32 %s64, 7
    %s67 = smul.addr %s65, 4
    %s68 = scalar_lea.vmem [#allocation5], %s67
    %v69 = vld [vmem:[%s68] sm:$0xf]
    %v70 = vld [vmem:[%s68 + $0x4] sm:$0xf]
    %v71 = vld [vmem:[%s68 + $0x8] sm:$0xf]
    %v72 = vld [vmem:[%s68 + $0xc] sm:$0xf]
    %v73 = vld [vmem:[%s68 + $0x10] sm:$0xf]
    %v74 = vld [vmem:[%s68 + $0x14] sm:$0xf]
    %v75 = vld [vmem:[%s68 + $0x18] sm:$0xf]
    %v76 = vld [vmem:[%s68 + $0x1c] sm:$0xf]
    %v77 = vld [vmem:[%s68 + $0x20] sm:$0xf]
    %v78 = vld [vmem:[%s68 + $0x24] sm:$0xf]
    %v79 = vld [vmem:[%s68 + $0x28] sm:$0xf]
    %v80 = vld [vmem:[%s68 + $0x2c] sm:$0xf]
    %v81 = vld [vmem:[%s68 + $0x30] sm:$0xf]
    %v82 = vld [vmem:[%s68 + $0x34] sm:$0xf]
    %v83 = vld [vmem:[%s68 + $0x38] sm:$0xf]
    %v84 = vld [vmem:[%s68 + $0x3c] sm:$0xf]
    %v85 = vld [vmem:[#allocation7] sm:$0xff]
    %v86 = vld [vmem:[#allocation7 + $0x8] sm:$0xff]
    %v87 = vld [vmem:[#allocation7 + $0x10] sm:$0xff]
    %v88 = vld [vmem:[#allocation7 + $0x18] sm:$0xff]
    %v89 = vld [vmem:[#allocation7 + $0x20] sm:$0xff]
    %v90 = vld [vmem:[#allocation7 + $0x28] sm:$0xff]
    %v91 = vld [vmem:[#allocation7 + $0x30] sm:$0xff]
    %v92 = vld [vmem:[#allocation7 + $0x38] sm:$0xff]
    %v93 = vld [vmem:[#allocation7 + $0x40] sm:$0xff]
    %v94 = vld [vmem:[#allocation7 + $0x48] sm:$0xff]
    %v95 = vld [vmem:[#allocation7 + $0x50] sm:$0xff]
    %v96 = vld [vmem:[#allocation7 + $0x58] sm:$0xff]
    %v97 = vld [vmem:[#allocation7 + $0x60] sm:$0xff]
    %v98 = vld [vmem:[#allocation7 + $0x68] sm:$0xff]
    %v99 = vld [vmem:[#allocation7 + $0x70] sm:$0xff]
    %v100 = vld [vmem:[#allocation7 + $0x78] sm:$0xff]
    %v101 = vld [vmem:[#allocation2] sm:$0xf]
    %v102 = vld [vmem:[#allocation2 + $0x4] sm:$0xf]
    %v103 = vld [vmem:[#allocation2 + $0x8] sm:$0xf]
    %v104 = vld [vmem:[#allocation2 + $0xc] sm:$0xf]
    %v105 = vld [vmem:[#allocation2 + $0x10] sm:$0xf]
    %v106 = vld [vmem:[#allocation2 + $0x14] sm:$0xf]
    %v107 = vld [vmem:[#allocation2 + $0x18] sm:$0xf]
    %v108 = vld [vmem:[#allocation2 + $0x1c] sm:$0xf]
    %v109 = vld [vmem:[#allocation2 + $0x20] sm:$0xf]
    %v110 = vld [vmem:[#allocation2 + $0x24] sm:$0xf]
    %v111 = vld [vmem:[#allocation2 + $0x28] sm:$0xf]
    %v112 = vld [vmem:[#allocation2 + $0x2c] sm:$0xf]
    %v113 = vld [vmem:[#allocation2 + $0x30] sm:$0xf]
    %v114 = vld [vmem:[#allocation2 + $0x34] sm:$0xf]
    %v115 = vld [vmem:[#allocation2 + $0x38] sm:$0xf]
    %v116 = vld [vmem:[#allocation2 + $0x3c] sm:$0xf]
    %v133 = vunpack.c.l.b16 %v101
    %v134 = vunpack.c.l.b16 %v102
    %v135 = vunpack.c.l.b16 %v103
    %v136 = vunpack.c.l.b16 %v104
    %v137 = vunpack.c.l.b16 %v105
    %v138 = vunpack.c.l.b16 %v106
    %v139 = vunpack.c.l.b16 %v107
    %v140 = vunpack.c.l.b16 %v108
    %v141 = vunpack.c.l.b16 %v109
    %v142 = vunpack.c.l.b16 %v110
    %v143 = vunpack.c.l.b16 %v111
    %v144 = vunpack.c.l.b16 %v112
    %v145 = vunpack.c.l.b16 %v113
    %v146 = vunpack.c.l.b16 %v114
    %v147 = vunpack.c.l.b16 %v115
    %v148 = vunpack.c.l.b16 %v116
    %v149 = vpack.c.b16 %v134, %v133
    %v150 = vpack.c.b16 %v136, %v135
    %v151 = vpack.c.b16 %v138, %v137
    %v152 = vpack.c.b16 %v140, %v139
    %v153 = vpack.c.b16 %v142, %v141
    %v154 = vpack.c.b16 %v144, %v143
    %v155 = vpack.c.b16 %v146, %v145
    %v156 = vpack.c.b16 %v148, %v147
    %v181 = vunpack.c.l.b16 %v69
    %v182 = vunpack.c.l.b16 %v70
    %v183 = vunpack.c.l.b16 %v71
    %v184 = vunpack.c.l.b16 %v72
    %v185 = vunpack.c.l.b16 %v73
    %v186 = vunpack.c.l.b16 %v74
    %v187 = vunpack.c.l.b16 %v75
    %v188 = vunpack.c.l.b16 %v76
    %v189 = vunpack.c.l.b16 %v77
    %v190 = vunpack.c.l.b16 %v78
    %v191 = vunpack.c.l.b16 %v79
    %v192 = vunpack.c.l.b16 %v80
    %v193 = vunpack.c.l.b16 %v81
    %v194 = vunpack.c.l.b16 %v82
    %v195 = vunpack.c.l.b16 %v83
    %v196 = vunpack.c.l.b16 %v84
    %v197 = vpack.c.b16 %v182, %v181
    %v198 = vpack.c.b16 %v184, %v183
    %v199 = vpack.c.b16 %v186, %v185
    %v200 = vpack.c.b16 %v188, %v187
    %v201 = vpack.c.b16 %v190, %v189
    %v202 = vpack.c.b16 %v192, %v191
    %v203 = vpack.c.b16 %v194, %v193
    %v204 = vpack.c.b16 %v196, %v195
    %213 = vmatprep.subr.bf16.mxu0 0
    %214 = vmatpush1.bf16.msra.mxu0 %v204
    %215 = vmatprep.subr.bf16.mxu0 0
    %216 = vmatpush1.bf16.msra.mxu0 %v203
    %217 = vmatprep.subr.bf16.mxu0 0
    %218 = vmatpush1.bf16.msra.mxu0 %v202
    %219 = vmatprep.subr.bf16.mxu0 0
    %220 = vmatpush1.bf16.msra.mxu0 %v201
    %221 = vmatprep.subr.bf16.mxu0 0
    %222 = vmatpush1.bf16.msra.mxu0 %v200
    %223 = vmatprep.subr.bf16.mxu0 0
    %224 = vmatpush1.bf16.msra.mxu0 %v199
    %225 = vmatprep.subr.bf16.mxu0 0
    %226 = vmatpush1.bf16.msra.mxu0 %v198
    %227 = vmatprep.subr.bf16.mxu0 0
    %228 = vmatpush1.bf16.msra.mxu0 %v197
    %229 = vmatprep.subr.bf16.mxu0 0
    %230 = vmatpush2.bf16.msra.mxu0 0
    %231 = vmatprep.subr.bf16.mxu0 0
    %232 = vmatpush2.bf16.msra.mxu0 0
    %233 = vmatprep.subr.bf16.mxu0 0
    %234 = vmatpush2.bf16.msra.mxu0 0
    %235 = vmatprep.subr.bf16.mxu0 0
    %236 = vmatpush2.bf16.msra.mxu0 0
    %237 = vmatprep.subr.bf16.mxu0 0
    %238 = vmatpush2.bf16.msra.mxu0 0
    %239 = vmatprep.subr.bf16.mxu0 0
    %240 = vmatpush2.bf16.msra.mxu0 0
    %241 = vmatprep.subr.bf16.mxu0 0
    %242 = vmatpush2.bf16.msra.mxu0 0
    %243 = vmatprep.subr.bf16.mxu0 0
    %244 = vmatpush2.bf16.msra.mxu0 0
    %245 = vmatprep.mubr.bf16.mxu0 0
    %246 = vmatmul.mubr.bf16.gmra.mxu0 %v149
    %v247 = vpop.f32.mrf.mxu0
    %v248 = vadd.f32 0.0, %v247
    %v249 = vpop.f32.mrf.mxu0
    %v250 = vpop.f32.mrf.mxu0
    %v251 = vadd.f32 0.0, %v250
    %v252 = vpop.f32.mrf.mxu0
    %253 = vmatprep.mubr.bf16.mxu0 0
    %254 = vmatmul.mubr.bf16.gmra.mxu0 %v150
    %v255 = vpop.f32.mrf.mxu0
    %v256 = vadd.f32 0.0, %v255
    %v257 = vpop.f32.mrf.mxu0
    %v258 = vpop.f32.mrf.mxu0
    %v259 = vadd.f32 0.0, %v258
    %v260 = vpop.f32.mrf.mxu0
    %261 = vmatprep.mubr.bf16.mxu0 0
    %262 = vmatmul.mubr.bf16.gmra.mxu0 %v151
    %v263 = vpop.f32.mrf.mxu0
    %v264 = vadd.f32 0.0, %v263
    %v265 = vpop.f32.mrf.mxu0
    %v266 = vpop.f32.mrf.mxu0
    %v267 = vadd.f32 0.0, %v266
    %v268 = vpop.f32.mrf.mxu0
    %269 = vmatprep.mubr.bf16.mxu0 0
    %270 = vmatmul.mubr.bf16.gmra.mxu0 %v152
    %v271 = vpop.f32.mrf.mxu0
    %v272 = vadd.f32 0.0, %v271
    %v273 = vpop.f32.mrf.mxu0
    %v274 = vpop.f32.mrf.mxu0
    %v275 = vadd.f32 0.0, %v274
    %v276 = vpop.f32.mrf.mxu0
    %277 = vmatprep.mubr.bf16.mxu0 0
    %278 = vmatmul.mubr.bf16.gmra.mxu0 %v153
    %v279 = vpop.f32.mrf.mxu0
    %v280 = vadd.f32 0.0, %v279
    %v281 = vpop.f32.mrf.mxu0
    %v282 = vpop.f32.mrf.mxu0
    %v283 = vadd.f32 0.0, %v282
    %v284 = vpop.f32.mrf.mxu0
    %285 = vmatprep.mubr.bf16.mxu0 0
    %286 = vmatmul.mubr.bf16.gmra.mxu0 %v154
    %v287 = vpop.f32.mrf.mxu0
    %v288 = vadd.f32 0.0, %v287
    %v289 = vpop.f32.mrf.mxu0
    %v290 = vpop.f32.mrf.mxu0
    %v291 = vadd.f32 0.0, %v290
    %v292 = vpop.f32.mrf.mxu0
    %293 = vmatprep.mubr.bf16.mxu0 0
    %294 = vmatmul.mubr.bf16.gmra.mxu0 %v155
    %v295 = vpop.f32.mrf.mxu0
    %v296 = vadd.f32 0.0, %v295
    %v297 = vpop.f32.mrf.mxu0
    %v298 = vpop.f32.mrf.mxu0
    %v299 = vadd.f32 0.0, %v298
    %v300 = vpop.f32.mrf.mxu0
    %301 = vmatprep.mubr.bf16.mxu0 0
    %302 = vmatmul.mubr.bf16.gmra.mxu0 %v156
    %v303 = vpop.f32.mrf.mxu0
    %v304 = vadd.f32 0.0, %v303
    %v305 = vpop.f32.mrf.mxu0
    %v306 = vpop.f32.mrf.mxu0
    %v307 = vadd.f32 0.0, %v306
    %v308 = vpop.f32.mrf.mxu0
    %309 = vdwg.mxu0
    %v310 = vadd.f32 %v85, %v248
    %v311 = vadd.f32 %v86, %v251
    %v312 = vadd.f32 %v87, %v256
    %v313 = vadd.f32 %v88, %v259
    %v314 = vadd.f32 %v89, %v264
    %v315 = vadd.f32 %v90, %v267
    %v316 = vadd.f32 %v91, %v272
    %v317 = vadd.f32 %v92, %v275
    %v318 = vadd.f32 %v93, %v280
    %v319 = vadd.f32 %v94, %v283
    %v320 = vadd.f32 %v95, %v288
    %v321 = vadd.f32 %v96, %v291
    %v322 = vadd.f32 %v97, %v296
    %v323 = vadd.f32 %v98, %v299
    %v324 = vadd.f32 %v99, %v304
    %v325 = vadd.f32 %v100, %v307
    %326 = vst [vmem:[#allocation7] sm:$0xff] %v310
    %327 = vst [vmem:[#allocation7 + $0x8] sm:$0xff] %v311
    %328 = vst [vmem:[#allocation7 + $0x10] sm:$0xff] %v312
    %329 = vst [vmem:[#allocation7 + $0x18] sm:$0xff] %v313
    %330 = vst [vmem:[#allocation7 + $0x20] sm:$0xff] %v314
    %331 = vst [vmem:[#allocation7 + $0x28] sm:$0xff] %v315
    %332 = vst [vmem:[#allocation7 + $0x30] sm:$0xff] %v316
    %333 = vst [vmem:[#allocation7 + $0x38] sm:$0xff] %v317
    %334 = vst [vmem:[#allocation7 + $0x40] sm:$0xff] %v318
    %335 = vst [vmem:[#allocation7 + $0x48] sm:$0xff] %v319
    %336 = vst [vmem:[#allocation7 + $0x50] sm:$0xff] %v320
    %337 = vst [vmem:[#allocation7 + $0x58] sm:$0xff] %v321
    %338 = vst [vmem:[#allocation7 + $0x60] sm:$0xff] %v322
    %339 = vst [vmem:[#allocation7 + $0x68] sm:$0xff] %v323
    %340 = vst [vmem:[#allocation7 + $0x70] sm:$0xff] %v324
    %341 = vst [vmem:[#allocation7 + $0x78] sm:$0xff] %v325
    // Predicated region
    $region22: #{tpu_custom_call.1} parent=1 // pred_check
      %p342 = pneg %p44
    $region23: #{tpu_custom_call.1} parent=1 // pred_check_branch
      %344 = sbr.rel (%p342) target = $region25
    $region24: #{tpu_custom_call.1} parent=1 // pred_region
      %v345 = vld [vmem:[#allocation7] sm:$0xff]
      %v346 = vld [vmem:[#allocation7 + $0x8] sm:$0xff]
      %v347 = vld [vmem:[#allocation7 + $0x10] sm:$0xff]
      %v348 = vld [vmem:[#allocation7 + $0x18] sm:$0xff]
      %v349 = vld [vmem:[#allocation7 + $0x20] sm:$0xff]
      %v350 = vld [vmem:[#allocation7 + $0x28] sm:$0xff]
      %v351 = vld [vmem:[#allocation7 + $0x30] sm:$0xff]
      %v352 = vld [vmem:[#allocation7 + $0x38] sm:$0xff]
      %v353 = vld [vmem:[#allocation7 + $0x40] sm:$0xff]
      %v354 = vld [vmem:[#allocation7 + $0x48] sm:$0xff]
      %v355 = vld [vmem:[#allocation7 + $0x50] sm:$0xff]
      %v356 = vld [vmem:[#allocation7 + $0x58] sm:$0xff]
      %v357 = vld [vmem:[#allocation7 + $0x60] sm:$0xff]
      %v358 = vld [vmem:[#allocation7 + $0x68] sm:$0xff]
      %v359 = vld [vmem:[#allocation7 + $0x70] sm:$0xff]
      %v360 = vld [vmem:[#allocation7 + $0x78] sm:$0xff]
      %v361 = vadd.f32 %v345, %v346
      %v362 = vadd.f32 %v361, %v347
      %v363 = vadd.f32 %v362, %v348
      %v364 = vadd.f32 %v363, %v349
      %v365 = vadd.f32 %v364, %v350
      %v366 = vadd.f32 %v365, %v351
      %v367 = vadd.f32 %v366, %v352
      %v368 = vadd.f32 %v367, %v353
      %v369 = vadd.f32 %v368, %v354
      %v370 = vadd.f32 %v369, %v355
      %v371 = vadd.f32 %v370, %v356
      %v372 = vadd.f32 %v371, %v357
      %v373 = vadd.f32 %v372, %v358
      %v374 = vadd.f32 %v373, %v359
      %v375 = vadd.f32 %v374, %v360
      %v376 = vrot.slane %v375, 4
      %v377 = vadd.f32 %v375, %v376
      %v378 = vrot.slane %v377, 2
      %v379 = vadd.f32 %v377, %v378
      %v380 = vrot.slane %v379, 1
      %v381 = vadd.f32 %v379, %v380
      %v382 = vmul.f32 %v345, %v345
      %v383 = vmul.f32 %v346, %v346
      %v384 = vmul.f32 %v347, %v347
      %v385 = vmul.f32 %v348, %v348
      %v386 = vmul.f32 %v349, %v349
      %v387 = vmul.f32 %v350, %v350
      %v388 = vmul.f32 %v351, %v351
      %v389 = vmul.f32 %v352, %v352
      %v390 = vmul.f32 %v353, %v353
      %v391 = vmul.f32 %v354, %v354
      %v392 = vmul.f32 %v355, %v355
      %v393 = vmul.f32 %v356, %v356
      %v394 = vmul.f32 %v357, %v357
      %v395 = vmul.f32 %v358, %v358
      %v396 = vmul.f32 %v359, %v359
      %v397 = vmul.f32 %v360, %v360
      %v398 = vadd.f32 %v382, %v383
      %v399 = vadd.f32 %v398, %v384
      %v400 = vadd.f32 %v399, %v385
      %v401 = vadd.f32 %v400, %v386
      %v402 = vadd.f32 %v401, %v387
      %v403 = vadd.f32 %v402, %v388
      %v404 = vadd.f32 %v403, %v389
      %v405 = vadd.f32 %v404, %v390
      %v406 = vadd.f32 %v405, %v391
      %v407 = vadd.f32 %v406, %v392
      %v408 = vadd.f32 %v407, %v393
      %v409 = vadd.f32 %v408, %v394
      %v410 = vadd.f32 %v409, %v395
      %v411 = vadd.f32 %v410, %v396
      %v412 = vadd.f32 %v411, %v397
      %v413 = vrot.slane %v412, 4
      %v414 = vadd.f32 %v412, %v413
      %v415 = vrot.slane %v414, 2
      %v416 = vadd.f32 %v414, %v415
      %v417 = vrot.slane %v416, 1
      %v418 = vadd.f32 %v416, %v417
      %v419 = vlaneseq
      %v420 = vshrl.u32 %v419, 7
      %vm421 = vcmp.eq.s32.totalorder %v420, 0
      %vm422 = vcmp.eq.s32.totalorder %v420, 1
      %v423 = vsel %vm422, %v418, 0.0
      %v424 = vsel %vm421, %v381, %v423
      %425 = vst [vmem:[#allocation8] sm:$0xff] %v424
    $region25: #{tpu_custom_call.1} parent=1 // pred_fallthru
      _
    // Predicated region
    $region26: #{tpu_custom_call.1} parent=1 // pred_check
      _
    $region27: #{tpu_custom_call.1} parent=1 // pred_check_branch
      %427 = sbr.rel (0) target = $region29
    $region28: #{tpu_custom_call.1} parent=1 // pred_region
      %s429 = ssub.s32 2048, 2048
      %430 = vsyncadd [#allocation4], %s429
      %s431 = sshll.u32 [#allocation7], 4
      %s432 = int_to_ptr.vmem [resolvable:$true] %s431
      %437 = dma.vmem_to_hbm [thread:$0]  %s432, 2048, %s2, [#allocation4], 128, 128, 8
    $region29: #{tpu_custom_call.1} parent=1 // pred_fallthru
      _
    // Predicated region
    $region30: #{tpu_custom_call.1} parent=1 // pred_check
      _
    $region31: #{tpu_custom_call.1} parent=1 // pred_check_branch
      %439 = sbr.rel (0) target = $region33
    $region32: #{tpu_custom_call.1} parent=1 // pred_region
      %s441 = ssub.s32 128, 128
      %442 = vsyncadd [#allocation9], %s441
      %s444 = sshll.u32 [#allocation8], 4
      %s445 = int_to_ptr.vmem [resolvable:$true] %s444
      %447 = dma.vmem_to_hbm [thread:$0]  %s445, 128, %s3, [#allocation9]
    $region33: #{tpu_custom_call.1} parent=1 // pred_fallthru
      _
    // Predicated region
    $region34: #{tpu_custom_call.1} parent=1 // pred_check
      _
    $region35: #{tpu_custom_call.1} parent=1 // pred_check_branch
      %449 = sbr.rel (0) target = $region37
    $region36: #{tpu_custom_call.1} parent=1 // pred_region
      %450 = dma.done [#allocation4], 2048
    $region37: #{tpu_custom_call.1} parent=1 // pred_fallthru
      _
    // Predicated region
    $region38: #{tpu_custom_call.1} parent=1 // pred_check
      _
    $region39: #{tpu_custom_call.1} parent=1 // pred_check_branch
      %452 = sbr.rel (0) target = $region41
    $region40: #{tpu_custom_call.1} parent=1 // pred_region
      %453 = dma.done [#allocation9], 128
    $region41: #{tpu_custom_call.1} parent=1 // pred_fallthru
      _
    %454 = vsyncpa [#allocation3], 1
    %455 = vsyncpa [#allocation6], 1
    %456 = vsyncpa [#allocation4], 1
    %457 = vsyncpa [#allocation9], 1

</llo_original>
